<compile_context>
chip_gen: v6e
topology: v6e:2x2x1
jax: 0.10.0
libtpu: 0.0.40
codegen_flags: <defaults>
</compile_context>

<pallas_src>
import functools

import jax
import jax.numpy as jnp
import numpy as np
from jax.experimental import pallas as pl
from jax.experimental.pallas import tpu as pltpu

EPS = 1e-5


def _aligned_divisors(dim, align, max_tile):
    """Multiples of `align` that divide `dim` and are <= max_tile."""
    return [t for t in range(align, min(dim, max_tile) + 1, align) if dim % t == 0]


def _pick_tile(dim, align, max_tile):
    """Largest multiple-of-`align` divisor of `dim` <= max_tile; else full dim."""
    cands = _aligned_divisors(dim, align, max_tile)
    return max(cands) if cands else dim


# ----------------------------------------------------------------------------
# Single-pass kernel: one grid step per channel group, x read from HBM once.
# ----------------------------------------------------------------------------
def _bn_add_relu_fused_kernel(x_ref, y_ref, g_ref, b_ref, o_ref, *, inv_count):
    # Blocks: x / y / o -> (N, tc, HW);  gamma / beta -> (1, tc, 1).
    x = x_ref[...].astype(jnp.float32)
    s = jnp.sum(x, axis=2, keepdims=True)                   # (N, tc, 1) lane reduce
    mean = jnp.sum(s, axis=0, keepdims=True) * inv_count    # (1, tc, 1)
    d = x - mean
    v = jnp.sum(d * d, axis=2, keepdims=True)               # true two-pass variance
    var = jnp.sum(v, axis=0, keepdims=True) * inv_count
    scale = g_ref[...] * jax.lax.rsqrt(var + EPS)            # (1, tc, 1)
    y = y_ref[...].astype(jnp.float32)
    out = y + d * scale + b_ref[...]
    o_ref[...] = jnp.maximum(out, 0.0).astype(o_ref.dtype)


# ----------------------------------------------------------------------------
# Two-pass fallback kernel (stats pass, then apply pass) for very large slabs.
# ----------------------------------------------------------------------------
def _bn_add_relu_two_pass_kernel(x_ref, y_ref, g_ref, b_ref, o_ref,
                                 sum_ref, sq_ref, scale_ref, shift_ref,
                                 *, inv_count):
    p = pl.program_id(1)          # 0 = stats pass, 1 = apply pass
    t = pl.program_id(2)          # reduction tile index (over N and H*W tiles)
    nt = pl.num_programs(2)

    @pl.when(p == 0)
    def _stats():
        @pl.when(t == 0)
        def _init():
            sum_ref[...] = jnp.zeros_like(sum_ref)
            sq_ref[...] = jnp.zeros_like(sq_ref)

        x = x_ref[0].astype(jnp.float32)                          # (TC, THW)
        sum_ref[...] += jnp.sum(x, axis=1, keepdims=True)
        sq_ref[...] += jnp.sum(x * x, axis=1, keepdims=True)

        @pl.when(t == nt - 1)
        def _finalize():
            mean = sum_ref[...] * inv_count                       # (TC, 1)
            # NOTE: E[x^2]-mean^2 (clamped); the single-pass path uses the
            # numerically safer two-pass formula and covers normal shapes.
            var = jnp.maximum(sq_ref[...] * inv_count - mean * mean, 0.0)
            inv_std = jax.lax.rsqrt(var + EPS)
            scale = g_ref[...] * inv_std
            scale_ref[...] = scale
            shift_ref[...] = b_ref[...] - mean * scale

    @pl.when(p == 1)
    def _apply():
        x = x_ref[0].astype(jnp.float32)
        y = y_ref[0].astype(jnp.float32)
        out = y + x * scale_ref[...] + shift_ref[...]
        o_ref[0] = jnp.maximum(out, 0.0).astype(o_ref.dtype)


def bn_add_relu(x84, x71, gamma, beta, *, max_c_tile=128, max_hw_tile=8192,
                vmem_budget_bytes=40 << 20, force_two_pass=False):
    """relu(x71 + BatchNorm2d(x84)) with batch statistics.  x84/x71: (N, C, H, W)."""
    N, C, H, W = x84.shape
    HW = H * W

    # Free reshapes only (no host-side transposes): channels on sublanes,
    # batch/spatial on lanes.
    x = x84.reshape(N, C, HW)
    y = x71.reshape(N, C, HW)

    cand_tc = _aligned_divisors(C, 8, max_c_tile) or [C]
    inv_count = 1.0 / float(N * HW)

    # ------------------------------------------------------------------
    # Primary path: single pass per channel group.  Roughly 10 block-sized VMEM
    # buffers are live (double-buffered x / residual / out + kernel temps), so
    # require 10 * block_bytes <= budget.
    # ------------------------------------------------------------------
    def group_bytes(t):
        return N * t * HW * 4

    fit = [t for t in cand_tc if 10 * group_bytes(t) <= vmem_budget_bytes]
    if fit and not force_two_pass:
        multi = [t for t in fit if C // t >= 2]     # keep both v7x TensorCores busy
        tc = max(multi) if multi else max(fit)
        n_c = C // tc
        g = gamma.reshape(1, C, 1).astype(jnp.float32)
        b = beta.reshape(1, C, 1).astype(jnp.float32)
        blk = (N, tc, HW)
        vmem_bytes = int(min(max(10 * group_bytes(tc) + (4 << 20), 16 << 20), 48 << 20))

        out = pl.pallas_call(
            functools.partial(_bn_add_relu_fused_kernel, inv_count=inv_count),
            out_shape=jax.ShapeDtypeStruct((N, C, HW), x84.dtype),
            grid_spec=pltpu.PrefetchScalarGridSpec(
                num_scalar_prefetch=0,
                grid=(n_c,),
                in_specs=[
                    pl.BlockSpec(blk, lambda c: (0, c, 0)),          # BN input x
                    pl.BlockSpec(blk, lambda c: (0, c, 0)),          # residual
                    pl.BlockSpec((1, tc, 1), lambda c: (0, c, 0)),   # gamma
                    pl.BlockSpec((1, tc, 1), lambda c: (0, c, 0)),   # beta
                ],
                out_specs=pl.BlockSpec(blk, lambda c: (0, c, 0)),
            ),
            compiler_params=pltpu.CompilerParams(
                dimension_semantics=("parallel",),   # channel groups independent
                vmem_limit_bytes=vmem_bytes,
            ),
        )(x, y, g, b)
        return out.reshape(N, C, H, W)

    # ------------------------------------------------------------------
    # Fallback: two-pass (stats pass, then apply pass) over reduction tiles.
    # ------------------------------------------------------------------
    thw = _pick_tile(HW, 128, max_hw_tile)   # lane tile (prefers large 128-multiples)
    # Guard the thw == HW fallback (HW with no 128-multiple divisor): pick a
    # channel tile so ~8 double-buffered blocks fit the VMEM budget.
    fit2 = [t for t in cand_tc if 8 * t * thw * 4 <= vmem_budget_bytes]
    if fit2:
        multi = [t for t in fit2 if C // t >= 2]
        tc = max(multi) if multi else max(fit2)
    else:
        tc = min(cand_tc)                    # best effort for pathological shapes
    n_c = C // tc
    n_hw = HW // thw
    n_red = N * n_hw                         # reduction tiles per channel group

    g = gamma.reshape(C, 1).astype(jnp.float32)
    b = beta.reshape(C, 1).astype(jnp.float32)

    def x_map(c, p, t):
        return (t // n_hw, c, t % n_hw)

    def pinned_map(c, p, t):
        # Pinned to tile 0 during the stats pass (p == 0): the residual block is
        # not re-fetched and no garbage output block is ever written back.
        return ((t // n_hw) * p, c, (t % n_hw) * p)

    def gb_map(c, p, t):
        return (c, 0)

    blk = (1, tc, thw)
    grid = (n_c, 2, n_red)

    block_bytes = tc * thw * 4
    vmem_bytes = int(min(max(8 * block_bytes + (2 << 20), 16 << 20), 48 << 20))

    kernel = functools.partial(_bn_add_relu_two_pass_kernel, inv_count=inv_count)

    out = pl.pallas_call(
        kernel,
        out_shape=jax.ShapeDtypeStruct((N, C, HW), x84.dtype),
        grid_spec=pltpu.PrefetchScalarGridSpec(
            num_scalar_prefetch=0,
            grid=grid,
            in_specs=[
                pl.BlockSpec(blk, x_map),          # BN input, read in both passes
                pl.BlockSpec(blk, pinned_map),     # residual, effectively read once
                pl.BlockSpec((tc, 1), gb_map),     # gamma
                pl.BlockSpec((tc, 1), gb_map),     # beta
            ],
            out_specs=pl.BlockSpec(blk, pinned_map),
            scratch_shapes=[
                pltpu.VMEM((tc, 1), jnp.float32),  # running sum
                pltpu.VMEM((tc, 1), jnp.float32),  # running sum of squares
                pltpu.VMEM((tc, 1), jnp.float32),  # folded scale = gamma * inv_std
                pltpu.VMEM((tc, 1), jnp.float32),  # folded shift = beta - mean*scale
            ],
        ),
        compiler_params=pltpu.CompilerParams(
            dimension_semantics=("parallel", "arbitrary", "arbitrary"),
            vmem_limit_bytes=vmem_bytes,
        ),
    )(x, y, g, b)

    return out.reshape(N, C, H, W)


def _reference(x84, x71, gamma, beta):
    mean = jnp.mean(x84, axis=(0, 2, 3), keepdims=True)
    var = jnp.var(x84, axis=(0, 2, 3), keepdims=True)   # biased, like PyTorch BN training
    xn = (x84 - mean) * jax.lax.rsqrt(var + EPS)
    xn = xn * gamma.reshape(1, -1, 1, 1) + beta.reshape(1, -1, 1, 1)
    return jnp.maximum(x71 + xn, 0.0)


if __name__ == "__main__":
    key = jax.random.PRNGKey(0)

    def run_case(n, c, h, w, tag, **kwargs):
        k1, k2, k3, k4 = jax.random.split(jax.random.fold_in(key, tag), 4)
        x84 = jax.random.normal(k1, (n, c, h, w), dtype=jnp.float32)
        x71 = jax.random.normal(k2, (n, c, h, w), dtype=jnp.float32)
        gamma = 1.0 + 0.1 * jax.random.normal(k3, (c,), dtype=jnp.float32)
        beta = 0.1 * jax.random.normal(k4, (c,), dtype=jnp.float32)

        out = jax.block_until_ready(bn_add_relu(x84, x71, gamma, beta, **kwargs))
        ref = _reference(x84, x71, gamma, beta)
        np.testing.assert_allclose(np.asarray(out), np.asarray(ref), rtol=1e-4, atol=1e-5)

    # Small shape, single-pass path (multi-batch reduction inside one block).
    run_case(2, 32, 16, 16, tag=0)
    # Original module shape (1, 448, 28, 28): single-pass, tc=112 -> 4 parallel groups.
    run_case(1, 448, 28, 28, tag=1)
    # Exercise the large-shape two-pass fallback on a small problem.
    run_case(2, 32, 16, 16, tag=2, force_two_pass=True)

    print("KERNEL_OK")
</pallas_src>

<mosaic_0001>
module attributes {stable_mosaic.version = 11 : i64} {
  func.func @_bn_add_relu_fused_kernel(%arg0: i32, %arg1: memref<2x16x256xf32, #tpu.memory_space<vmem>>, %arg2: memref<2x16x256xf32, #tpu.memory_space<vmem>>, %arg3: memref<1x16x1xf32, #tpu.memory_space<vmem>>, %arg4: memref<1x16x1xf32, #tpu.memory_space<vmem>>, %arg5: memref<2x16x256xf32, #tpu.memory_space<vmem>>) attributes {dimension_semantics = [#tpu.dimension_semantics<parallel>], iteration_bounds = array<i64: 2>, scalar_prefetch = 0 : i64, scratch_operands = 0 : i64, tpu.core_type = #tpu.core_type<tc>, window_params = [{transform_indices = @transform_0, window_bounds = array<i64: 2, 16, 256>}, {transform_indices = @transform_1, window_bounds = array<i64: 2, 16, 256>}, {transform_indices = @transform_2, window_bounds = array<i64: 1, 16, 1>}, {transform_indices = @transform_3, window_bounds = array<i64: 1, 16, 1>}, {transform_indices = @transform_4, window_bounds = array<i64: 2, 16, 256>}]} {
    %c0 = arith.constant 0 : index
    %c0_0 = arith.constant 0 : index
    %c0_1 = arith.constant 0 : index
    %0 = vector.load %arg1[%c0, %c0_0, %c0_1] : memref<2x16x256xf32, #tpu.memory_space<vmem>>, vector<2x16x256xf32>
    %cst = arith.constant dense<0.000000e+00> : vector<2x16xf32>
    %1 = vector.multi_reduction <add>, %0, %cst [2] : vector<2x16x256xf32> to vector<2x16xf32>
    %2 = vector.shape_cast %1 : vector<2x16xf32> to vector<2x16x1xf32>
    %cst_2 = arith.constant dense<0.000000e+00> : vector<16x1xf32>
    %3 = vector.multi_reduction <add>, %2, %cst_2 [0] : vector<2x16x1xf32> to vector<16x1xf32>
    %4 = vector.shape_cast %3 : vector<16x1xf32> to vector<1x16x1xf32>
    %cst_3 = arith.constant 0.001953125 : f32
    %5 = vector.broadcast %cst_3 : f32 to vector<1x16x1xf32>
    %6 = arith.mulf %4, %5 : vector<1x16x1xf32>
    %7 = vector.broadcast %6 : vector<1x16x1xf32> to vector<2x16x256xf32>
    %8 = arith.subf %0, %7 : vector<2x16x256xf32>
    %9 = arith.mulf %8, %8 : vector<2x16x256xf32>
    %cst_4 = arith.constant dense<0.000000e+00> : vector<2x16xf32>
    %10 = vector.multi_reduction <add>, %9, %cst_4 [2] : vector<2x16x256xf32> to vector<2x16xf32>
    %11 = vector.shape_cast %10 : vector<2x16xf32> to vector<2x16x1xf32>
    %cst_5 = arith.constant dense<0.000000e+00> : vector<16x1xf32>
    %12 = vector.multi_reduction <add>, %11, %cst_5 [0] : vector<2x16x1xf32> to vector<16x1xf32>
    %13 = vector.shape_cast %12 : vector<16x1xf32> to vector<1x16x1xf32>
    %cst_6 = arith.constant 0.001953125 : f32
    %14 = vector.broadcast %cst_6 : f32 to vector<1x16x1xf32>
    %15 = arith.mulf %13, %14 : vector<1x16x1xf32>
    %c0_7 = arith.constant 0 : index
    %c0_8 = arith.constant 0 : index
    %c0_9 = arith.constant 0 : index
    %16 = vector.load %arg3[%c0_7, %c0_8, %c0_9] : memref<1x16x1xf32, #tpu.memory_space<vmem>>, vector<1x16x1xf32>
    %cst_10 = arith.constant 9.99999974E-6 : f32
    %17 = vector.broadcast %cst_10 : f32 to vector<1x16x1xf32>
    %18 = arith.addf %15, %17 : vector<1x16x1xf32>
    %19 = math.rsqrt %18 : vector<1x16x1xf32>
    %20 = arith.mulf %16, %19 : vector<1x16x1xf32>
    %c0_11 = arith.constant 0 : index
    %c0_12 = arith.constant 0 : index
    %c0_13 = arith.constant 0 : index
    %21 = vector.load %arg2[%c0_11, %c0_12, %c0_13] : memref<2x16x256xf32, #tpu.memory_space<vmem>>, vector<2x16x256xf32>
    %22 = vector.broadcast %20 : vector<1x16x1xf32> to vector<2x16x256xf32>
    %23 = arith.mulf %8, %22 : vector<2x16x256xf32>
    %24 = arith.addf %21, %23 : vector<2x16x256xf32>
    %c0_14 = arith.constant 0 : index
    %c0_15 = arith.constant 0 : index
    %c0_16 = arith.constant 0 : index
    %25 = vector.load %arg4[%c0_14, %c0_15, %c0_16] : memref<1x16x1xf32, #tpu.memory_space<vmem>>, vector<1x16x1xf32>
    %26 = vector.broadcast %25 : vector<1x16x1xf32> to vector<2x16x256xf32>
    %27 = arith.addf %24, %26 : vector<2x16x256xf32>
    %cst_17 = arith.constant 0.000000e+00 : f32
    %28 = vector.broadcast %cst_17 : f32 to vector<2x16x256xf32>
    %29 = arith.maximumf %27, %28 : vector<2x16x256xf32>
    %c0_18 = arith.constant 0 : index
    %c0_19 = arith.constant 0 : index
    %c0_20 = arith.constant 0 : index
    %30 = vector.load %arg5[%c0_18, %c0_19, %c0_20] : memref<2x16x256xf32, #tpu.memory_space<vmem>>, vector<2x16x256xf32>
    tpu.vector_store %arg5[%c0_18, %c0_19, %c0_20], %29 {strides = array<i32>} : memref<2x16x256xf32, #tpu.memory_space<vmem>>, vector<2x16x256xf32>,
    return
  }
  func.func @transform_0(%arg0: i32) -> (i32, i32, i32) {
    %c0_i32 = arith.constant 0 : i32
    %c0_i32_0 = arith.constant 0 : i32
    %c0_i32_1 = arith.constant 0 : i32
    return %c0_i32, %arg0, %c0_i32_0 : i32, i32, i32
  }
  func.func @transform_1(%arg0: i32) -> (i32, i32, i32) {
    %c0_i32 = arith.constant 0 : i32
    %c0_i32_0 = arith.constant 0 : i32
    %c0_i32_1 = arith.constant 0 : i32
    return %c0_i32, %arg0, %c0_i32_0 : i32, i32, i32
  }
  func.func @transform_2(%arg0: i32) -> (i32, i32, i32) {
    %c0_i32 = arith.constant 0 : i32
    %c0_i32_0 = arith.constant 0 : i32
    %c0_i32_1 = arith.constant 0 : i32
    return %c0_i32, %arg0, %c0_i32_0 : i32, i32, i32
  }
  func.func @transform_3(%arg0: i32) -> (i32, i32, i32) {
    %c0_i32 = arith.constant 0 : i32
    %c0_i32_0 = arith.constant 0 : i32
    %c0_i32_1 = arith.constant 0 : i32
    return %c0_i32, %arg0, %c0_i32_0 : i32, i32, i32
  }
  func.func @transform_4(%arg0: i32) -> (i32, i32, i32) {
    %c0_i32 = arith.constant 0 : i32
    %c0_i32_0 = arith.constant 0 : i32
    %c0_i32_1 = arith.constant 0 : i32
    return %c0_i32, %arg0, %c0_i32_0 : i32, i32, i32
  }
}

</mosaic_0001>

<llo_original>
// kernel: tpu_custom_call.1
$region0: #{tpu_custom_call.1}
  #allocation0 [shape = 'u32[]', space=smem, size = 0x4, offset = 0x4, fixed_abs, tag = 'smem constant byte address 0x4 - core index']
  #allocation1 [shape = 'u32[144,128]{1,0:T(1,128)}', space=vmem, size = 0x12000, scoped, tag = 'internal scratch']
  #allocation8 [shape = 's32[]', space=sflag, size = 0x4, offset = 0, fixed_abs, tag = 'sflag constant byte address 0x0 - dummy sync flag']
  #allocation10 [shape = 's32[]', space=sflag, size = 0x4, offset = 0, fixed_abs, tag = 'sflag constant byte address 0x0 - dummy sync flag']
  #allocation12 [shape = 's32[]', space=sflag, size = 0x4, offset = 0, fixed_abs, tag = 'sflag constant byte address 0x0 - dummy sync flag']
  %s0 = inlined_call_operand.hbm [shape: f32[2,32,256], index: 0, kind: input, shape index: {}]
  %s1 = inlined_call_operand.hbm [shape: f32[2,32,256], index: 1, kind: input, shape index: {}]
  %s2 = inlined_call_operand.vmem [shape: f32[1,32,1], index: 2, kind: input, shape index: {}]
  %s3 = inlined_call_operand.vmem [shape: f32[1,32,1], index: 3, kind: input, shape index: {}]
  %s4 = inlined_call_operand.hbm [shape: f32[2,32,256], index: 4, kind: output, shape index: {}]
  %s5 = sld [smem:[#allocation0]]
  $region57: #{tpu_custom_call.1} parent=0
    _
  %s7 = ssub.s32 1, %s5
  %s8 = scalar_select 0, %s7, %s5
  $region1: #{tpu_custom_call.1} parent=0
    #allocation2 [shape = 'u8[65536]{0}', space=vmem, size = 0x10000, scoped, tag = 'input window, operand 0']
    #allocation3 [shape = 's32[2]{0}', space=sflag, size = 0x8, scoped, tag = 'scoped memory for tpu_custom_call.1']
    #allocation4 [shape = 's32[2]{0}', space=sflag, size = 0x8, scoped, tag = 'scoped memory for tpu_custom_call.1']
    #allocation5 [shape = 'u8[65536]{0}', space=vmem, size = 0x10000, scoped, tag = 'input window, operand 1']
    #allocation6 [shape = 's32[2]{0}', space=sflag, size = 0x8, scoped, tag = 'scoped memory for tpu_custom_call.1']
    #allocation7 [shape = 'u8[65536]{0}', space=vmem, size = 0x10000, scoped, tag = 'output window, operand 0']
    %9 = vsyncpa [#allocation3], 0
    %s10 = scalar_lea.sflag [#allocation3], 1
    %11 = vsyncpa %s10, 0
    %12 = vsyncpa [#allocation6], 0
    %s13 = scalar_lea.sflag [#allocation6], 1
    %14 = vsyncpa %s13, 0
    %15 = vsyncpa [#allocation4], 0
    %s16 = scalar_lea.sflag [#allocation4], 1
    %17 = vsyncpa %s16, 0
    loop: start=0, step=1, limit=4
    $region2: #{tpu_custom_call.1} parent=1 // loop_pre_header
      _
    $region3: #{tpu_custom_call.1} parent=1 // loop_header
      %s19 = sphi 0, %s23
      %p20 = scmp.ge.s32.totalorder %s19, 4
      %s29 = sphi 0, %s31
      %s32 = sphi 0, %s29
      %s33 = sphi 0, %s32
      %s49 = sphi 0, %s33
      %s55 = sphi 0, %s57
      %s58 = sphi 0, %s55
      %s59 = sphi 0, %s58
      %s75 = sphi 0, %s59
      %s81 = sphi 0, %s83
      %s84 = sphi 0, %s81
      %s85 = sphi 0, %s84
      %s101 = sphi 0, %s85
      %s107 = sphi 0, %s109
      %s110 = sphi 0, %s107
      %s111 = sphi 0, %s110
      %s127 = sphi 0, %s111
      %s133 = sphi 0, %s135
      %s136 = sphi 0, %s133
      %s137 = sphi 0, %s136
      %s153 = sphi 0, %s137
    $region4: #{tpu_custom_call.1} parent=1 // loop_header_branch
      %22 = sbr.rel (%p20) target = $region8
    $region5: #{tpu_custom_call.1} parent=1 // loop_body
      %s24 = ssub.s32 %s19, 1
      %s25 = ssub.s32 %s19, 2
      %s26 = sadd.s32 %s19, 1
      %s27 = ssub.s32 %s19, %s26
      %p28 = scmp.eq.s32.totalorder %s27, 0
      %s30 = sadd.s32 %s29, 1
      %s31 = scalar_select %p28, %s29, %s30
      %p34 = pneg %p28
      %p35 = scmp.eq.s32.totalorder %s19, 1
      %p36 = por %p34, %p35
      %p37 = scmp.ne.s32.totalorder %s29, %s32
      %p38 = scmp.eq.s32.totalorder %s19, 0
      %p39 = por %p37, %p38
      %p40 = scmp.ne.s32.totalorder %s29, %s32
      %p41 = scmp.eq.s32.totalorder %s24, 1
      %p42 = por %p40, %p41
      %p43 = scmp.ne.s32.totalorder %s32, %s33
      %p44 = scmp.eq.s32.totalorder %s24, 0
      %p45 = por %p43, %p44
      %p46 = scmp.ne.s32.totalorder %s32, %s33
      %p47 = scmp.eq.s32.totalorder %s25, 1
      %p48 = por %p46, %p47
      %p50 = scmp.ne.s32.totalorder %s33, %s49
      %p51 = scmp.eq.s32.totalorder %s25, 0
      %p52 = por %p50, %p51
      %s53 = ssub.s32 %s19, %s26
      %p54 = scmp.eq.s32.totalorder %s53, 0
      %s56 = sadd.s32 %s55, 1
      %s57 = scalar_select %p54, %s55, %s56
      %p60 = pneg %p54
      %p61 = scmp.eq.s32.totalorder %s19, 1
      %p62 = por %p60, %p61
      %p63 = scmp.ne.s32.totalorder %s55, %s58
      %p64 = scmp.eq.s32.totalorder %s19, 0
      %p65 = por %p63, %p64
      %p66 = scmp.ne.s32.totalorder %s55, %s58
      %p67 = scmp.eq.s32.totalorder %s24, 1
      %p68 = por %p66, %p67
      %p69 = scmp.ne.s32.totalorder %s58, %s59
      %p70 = scmp.eq.s32.totalorder %s24, 0
      %p71 = por %p69, %p70
      %p72 = scmp.ne.s32.totalorder %s58, %s59
      %p73 = scmp.eq.s32.totalorder %s25, 1
      %p74 = por %p72, %p73
      %p76 = scmp.ne.s32.totalorder %s59, %s75
      %p77 = scmp.eq.s32.totalorder %s25, 0
      %p78 = por %p76, %p77
      %s79 = ssub.s32 %s19, %s26
      %p80 = scmp.eq.s32.totalorder %s79, 0
      %s82 = sadd.s32 %s81, 1
      %s83 = scalar_select %p80, %s81, %s82
      %p86 = pneg %p80
      %p87 = scmp.eq.s32.totalorder %s19, 1
      %p88 = por %p86, %p87
      %p89 = scmp.ne.s32.totalorder %s81, %s84
      %p90 = scmp.eq.s32.totalorder %s19, 0
      %p91 = por %p89, %p90
      %p92 = scmp.ne.s32.totalorder %s81, %s84
      %p93 = scmp.eq.s32.totalorder %s24, 1
      %p94 = por %p92, %p93
      %p95 = scmp.ne.s32.totalorder %s84, %s85
      %p96 = scmp.eq.s32.totalorder %s24, 0
      %p97 = por %p95, %p96
      %p98 = scmp.ne.s32.totalorder %s84, %s85
      %p99 = scmp.eq.s32.totalorder %s25, 1
      %p100 = por %p98, %p99
      %p102 = scmp.ne.s32.totalorder %s85, %s101
      %p103 = scmp.eq.s32.totalorder %s25, 0
      %p104 = por %p102, %p103
      %s105 = ssub.s32 %s19, %s26
      %p106 = scmp.eq.s32.totalorder %s105, 0
      %s108 = sadd.s32 %s107, 1
      %s109 = scalar_select %p106, %s107, %s108
      %p112 = pneg %p106
      %p113 = scmp.eq.s32.totalorder %s19, 1
      %p114 = por %p112, %p113
      %p115 = scmp.ne.s32.totalorder %s107, %s110
      %p116 = scmp.eq.s32.totalorder %s19, 0
      %p117 = por %p115, %p116
      %p118 = scmp.ne.s32.totalorder %s107, %s110
      %p119 = scmp.eq.s32.totalorder %s24, 1
      %p120 = por %p118, %p119
      %p121 = scmp.ne.s32.totalorder %s110, %s111
      %p122 = scmp.eq.s32.totalorder %s24, 0
      %p123 = por %p121, %p122
      %p124 = scmp.ne.s32.totalorder %s110, %s111
      %p125 = scmp.eq.s32.totalorder %s25, 1
      %p126 = por %p124, %p125
      %p128 = scmp.ne.s32.totalorder %s111, %s127
      %p129 = scmp.eq.s32.totalorder %s25, 0
      %p130 = por %p128, %p129
      %s131 = ssub.s32 %s19, %s26
      %p132 = scmp.eq.s32.totalorder %s131, 0
      %s134 = sadd.s32 %s133, 1
      %s135 = scalar_select %p132, %s133, %s134
      %p138 = pneg %p132
      %p139 = scmp.eq.s32.totalorder %s19, 1
      %p140 = por %p138, %p139
      %p141 = scmp.ne.s32.totalorder %s133, %s136
      %p142 = scmp.eq.s32.totalorder %s19, 0
      %p143 = por %p141, %p142
      %p144 = scmp.ne.s32.totalorder %s133, %s136
      %p145 = scmp.eq.s32.totalorder %s24, 1
      %p146 = por %p144, %p145
      %p147 = scmp.ne.s32.totalorder %s136, %s137
      %p148 = scmp.eq.s32.totalorder %s24, 0
      %p149 = por %p147, %p148
      %p150 = scmp.ne.s32.totalorder %s136, %s137
      %p151 = scmp.eq.s32.totalorder %s25, 1
      %p152 = por %p150, %p151
      %p154 = scmp.ne.s32.totalorder %s137, %s153
      %p155 = scmp.eq.s32.totalorder %s25, 0
      %p156 = por %p154, %p155
      %p157 = scmp.le.s32.totalorder 1, %s19
      %p158 = scmp.lt.s32.totalorder %s19, 3
      %p159 = pnand %p157, %p158
      %p160 = pneg %p159
      // Predicated region
      $region9: #{tpu_custom_call.1} parent=5 // pred_check
        _
      $region10: #{tpu_custom_call.1} parent=5 // pred_check_branch
        %162 = sbr.rel (%p159) target = $region12
      $region11: #{tpu_custom_call.1} parent=5 // pred_region
        %s163 = ssub.s32 %s19, 1
      $region12: #{tpu_custom_call.1} parent=5 // pred_fallthru
        _
      %p164 = scmp.lt.s32.totalorder %s19, 2
      // Predicated region
      $region13: #{tpu_custom_call.1} parent=5 // pred_check
        %p165 = pneg %p164
      $region14: #{tpu_custom_call.1} parent=5 // pred_check_branch
        %167 = sbr.rel (%p165) target = $region16
      $region15: #{tpu_custom_call.1} parent=5 // pred_region
        // Predicated region
        $region17: #{tpu_custom_call.1} parent=15 // pred_check
          %p168 = pneg %p39
        $region18: #{tpu_custom_call.1} parent=15 // pred_check_branch
          %170 = sbr.rel (%p168) target = $region20
        $region19: #{tpu_custom_call.1} parent=15 // pred_region
          #allocation9 [shape = 'u32[6]{0}', space=smem, size = 0x18, scoped, tag = 'DMA stride descriptor']
          %s171 = sand.u32 %s29, 1
          %s172 = scalar_lea.sflag [#allocation3], %s171
          %s173 = sand.u32 %s29, 1
          %s174 = smul.addr %s173, 64
          %s175 = scalar_lea.vmem [#allocation2], %s174
          %s176 = smul.u32 2, %s19
          %s178 = ssub.s32 1024, 1024
          %179 = vsyncadd %s172, %s178
          %s180 = smul.addr %s176, 2
          %s181 = smul.addr %s180, 128
          %s182 = scalar_lea.hbm %s0, %s181
          %s184 = sshll.u32 1, 14
          %s185 = sxor.u32 4294967295, %s184
          %s187 = sld [smem:[#allocation0]]
          %s188 = sadd.s32 2, %s187
          %s190 = sshll.u32 7, 26
          %s191 = sxor.u32 4294967295, %s190
          %s192 = sand.u32 0, %s191
          %s193 = sshll.u32 %s188, 26
          %s194 = sor.u32 %s192, %s193
          %s195 = sshll.u32 %s175, 4
          %s196 = int_to_ptr.vmem [resolvable:$true] %s195
          %202 = sst [smem:[#allocation9]] 1024
          %s203 = scalar_lea.smem [#allocation9], 1
          %204 = sst [smem:[%s203]] 512
          %s205 = scalar_lea.smem [#allocation9], 2
          %206 = sst [smem:[%s205]] 2
          %s207 = scalar_lea.smem [#allocation9], 3
          %208 = sst [smem:[%s207]] 256
          %s209 = scalar_lea.smem [#allocation9], 4
          %210 = sst [smem:[%s209]] 256
          %s211 = scalar_lea.smem [#allocation9], 5
          %212 = sst [smem:[%s211]] 16
          %214 = dma.general %s182, 1024, %s196, %s172, 131072, [#allocation9], %s194, 0
        $region20: #{tpu_custom_call.1} parent=15 // pred_fallthru
          _
        // Predicated region
        $region21: #{tpu_custom_call.1} parent=15 // pred_check
          %p215 = pneg %p65
        $region22: #{tpu_custom_call.1} parent=15 // pred_check_branch
          %217 = sbr.rel (%p215) target = $region24
        $region23: #{tpu_custom_call.1} parent=15 // pred_region
          #allocation11 [shape = 'u32[6]{0}', space=smem, size = 0x18, scoped, tag = 'DMA stride descriptor']
          %s218 = sand.u32 %s55, 1
          %s219 = scalar_lea.sflag [#allocation6], %s218
          %s220 = sand.u32 %s55, 1
          %s221 = smul.addr %s220, 64
          %s222 = scalar_lea.vmem [#allocation5], %s221
          %s223 = smul.u32 2, %s19
          %s225 = ssub.s32 1024, 1024
          %226 = vsyncadd %s219, %s225
          %s227 = smul.addr %s223, 2
          %s228 = smul.addr %s227, 128
          %s229 = scalar_lea.hbm %s1, %s228
          %s231 = sshll.u32 1, 14
          %s232 = sxor.u32 4294967295, %s231
          %s234 = sld [smem:[#allocation0]]
          %s235 = sadd.s32 2, %s234
          %s237 = sshll.u32 7, 26
          %s238 = sxor.u32 4294967295, %s237
          %s239 = sand.u32 0, %s238
          %s240 = sshll.u32 %s235, 26
          %s241 = sor.u32 %s239, %s240
          %s242 = sshll.u32 %s222, 4
          %s243 = int_to_ptr.vmem [resolvable:$true] %s242
          %249 = sst [smem:[#allocation11]] 1024
          %s250 = scalar_lea.smem [#allocation11], 1
          %251 = sst [smem:[%s250]] 512
          %s252 = scalar_lea.smem [#allocation11], 2
          %253 = sst [smem:[%s252]] 2
          %s254 = scalar_lea.smem [#allocation11], 3
          %255 = sst [smem:[%s254]] 256
          %s256 = scalar_lea.smem [#allocation11], 4
          %257 = sst [smem:[%s256]] 256
          %s258 = scalar_lea.smem [#allocation11], 5
          %259 = sst [smem:[%s258]] 16
          %261 = dma.general %s229, 1024, %s243, %s219, 131072, [#allocation11], %s241, 0
        $region24: #{tpu_custom_call.1} parent=15 // pred_fallthru
          _
        // Predicated region
        $region25: #{tpu_custom_call.1} parent=15 // pred_check
          %p262 = pneg %p91
        $region26: #{tpu_custom_call.1} parent=15 // pred_check_branch
          %264 = sbr.rel (%p262) target = $region28
        $region27: #{tpu_custom_call.1} parent=15 // pred_region
          %s265 = smul.u32 2, %s19
          %p266 = scmp.lt.s32.totalorder %s265, 3
          %s267 = scalar_select %p266, %s265, 3
          %s268 = smul.addr %s267, 8
          %s269 = scalar_lea.vmem %s2, %s268
          %s270 = smul.u32 2, %s19
        $region28: #{tpu_custom_call.1} parent=15 // pred_fallthru
          _
        // Predicated region
        $region29: #{tpu_custom_call.1} parent=15 // pred_check
          %p271 = pneg %p117
        $region30: #{tpu_custom_call.1} parent=15 // pred_check_branch
          %273 = sbr.rel (%p271) target = $region32
        $region31: #{tpu_custom_call.1} parent=15 // pred_region
          %s274 = smul.u32 2, %s19
          %p275 = scmp.lt.s32.totalorder %s274, 3
          %s276 = scalar_select %p275, %s274, 3
          %s277 = smul.addr %s276, 8
          %s278 = scalar_lea.vmem %s3, %s277
          %s279 = smul.u32 2, %s19
        $region32: #{tpu_custom_call.1} parent=15 // pred_fallthru
          _
      $region16: #{tpu_custom_call.1} parent=5 // pred_fallthru
        _
      %p280 = scmp.le.s32.totalorder 1, %s19
      %p281 = scmp.lt.s32.totalorder %s19, 3
      %p282 = pnand %p280, %p281
      %p283 = pneg %p282
      // Predicated region
      $region33: #{tpu_custom_call.1} parent=5 // pred_check
        _
      $region34: #{tpu_custom_call.1} parent=5 // pred_check_branch
        %285 = sbr.rel (%p282) target = $region36
      $region35: #{tpu_custom_call.1} parent=5 // pred_region
        %s286 = ssub.s32 %s19, 1
        %s287 = sand.u32 %s32, 1
        %s288 = scalar_lea.sflag [#allocation3], %s287
        %s289 = sand.u32 %s32, 1
        %s290 = smul.addr %s289, 64
        %s291 = scalar_lea.vmem [#allocation2], %s290
        // Predicated region
        $region37: #{tpu_custom_call.1} parent=35 // pred_check
          %p292 = pneg %p45
        $region38: #{tpu_custom_call.1} parent=35 // pred_check_branch
          %294 = sbr.rel (%p292) target = $region40
        $region39: #{tpu_custom_call.1} parent=35 // pred_region
          %295 = dma.done %s288, 1024
        $region40: #{tpu_custom_call.1} parent=35 // pred_fallthru
          _
        %s296 = sand.u32 %s58, 1
        %s297 = scalar_lea.sflag [#allocation6], %s296
        %s298 = sand.u32 %s58, 1
        %s299 = smul.addr %s298, 64
        %s300 = scalar_lea.vmem [#allocation5], %s299
        // Predicated region
        $region41: #{tpu_custom_call.1} parent=35 // pred_check
          %p301 = pneg %p71
        $region42: #{tpu_custom_call.1} parent=35 // pred_check_branch
          %303 = sbr.rel (%p301) target = $region44
        $region43: #{tpu_custom_call.1} parent=35 // pred_region
          %304 = dma.done %s297, 1024
        $region44: #{tpu_custom_call.1} parent=35 // pred_fallthru
          _
        %s305 = sand.u32 %s32, 1
        %s306 = scalar_lea.sflag [#allocation3], %s305
        %s307 = sand.u32 %s32, 1
        %s308 = smul.addr %s307, 64
        %s309 = scalar_lea.vmem [#allocation2], %s308
        %p310 = pneg %p45
        %p311 = pneg %p42
        %s312 = sand.u32 %s58, 1
        %s313 = scalar_lea.sflag [#allocation6], %s312
        %s314 = sand.u32 %s58, 1
        %s315 = smul.addr %s314, 64
        %s316 = scalar_lea.vmem [#allocation5], %s315
        %p317 = pneg %p71
        %p318 = pneg %p68
        %s319 = smul.u32 2, %s24
        %p320 = scmp.lt.s32.totalorder %s319, 3
        %s321 = scalar_select %p320, %s319, 3
        %s322 = smul.addr %s321, 8
        %s323 = scalar_lea.vmem %s2, %s322
        %p324 = pneg %p97
        %p325 = pneg %p94
        %s326 = smul.u32 2, %s24
        %p327 = scmp.lt.s32.totalorder %s326, 3
        %s328 = scalar_select %p327, %s326, 3
        %s329 = smul.addr %s328, 8
        %s330 = scalar_lea.vmem %s3, %s329
        %p331 = pneg %p123
        %p332 = pneg %p120
        %p333 = pneg %p149
        %p334 = pneg %p146
        %s335 = sand.u32 %s136, 1
        %s336 = scalar_lea.sflag [#allocation4], %s335
        %s337 = sand.u32 %s136, 1
        %s338 = smul.addr %s337, 64
        %s339 = scalar_lea.vmem [#allocation7], %s338
        %s340 = smul.u32 2, %s24
        %s341 = smul.u32 2, %s24
        %s342 = smul.u32 2, %s24
        %p343 = scmp.lt.s32.totalorder %s342, 3
        %s344 = scalar_select %p343, %s342, 3
        %s345 = smul.addr %s344, 8
        %s346 = scalar_lea.vmem %s2, %s345
        %s347 = smul.u32 2, %s24
        %s348 = smul.u32 2, %s24
        %p349 = scmp.lt.s32.totalorder %s348, 3
        %s350 = scalar_select %p349, %s348, 3
        %s351 = smul.addr %s350, 8
        %s352 = scalar_lea.vmem %s3, %s351
        %s353 = smul.u32 2, %s24
        %s354 = smul.u32 2, %s24
        %v355 = vld [vmem:[%s291] sm:$0xff]
        %v356 = vld [vmem:[%s291 + $0x8] sm:$0xff]
        %v357 = vld [vmem:[%s291 + $0x10] sm:$0xff]
        %v358 = vld [vmem:[%s291 + $0x18] sm:$0xff]
        %v359 = vld [vmem:[%s291 + $0x20] sm:$0xff]
        %v360 = vld [vmem:[%s291 + $0x28] sm:$0xff]
        %v361 = vld [vmem:[%s291 + $0x30] sm:$0xff]
        %v362 = vld [vmem:[%s291 + $0x38] sm:$0xff]
        %v363 = vadd.f32 %v355, %v356
        %364 = vadd.xlane.f32.xlu0 %v363
        %v365 = vpop.xlane.xlu0 %364
        %v366 = vadd.f32 %v357, %v358
        %367 = vadd.xlane.f32.xlu0 %v366
        %v368 = vpop.xlane.xlu0 %367
        %v369 = vadd.f32 %v359, %v360
        %370 = vadd.xlane.f32.xlu0 %v369
        %v371 = vpop.xlane.xlu0 %370
        %v372 = vadd.f32 %v361, %v362
        %373 = vadd.xlane.f32.xlu0 %v372
        %v374 = vpop.xlane.xlu0 %373
        %v375 = vadd.f32 %v365, %v371
        %v376 = vadd.f32 %v368, %v374
        %v377 = vmul.f32 %v375, 0.001953125
        %v378 = vmul.f32 %v376, 0.001953125
        %v379 = vsub.f32 %v355, %v377
        %v380 = vsub.f32 %v356, %v377
        %v381 = vsub.f32 %v357, %v378
        %v382 = vsub.f32 %v358, %v378
        %v383 = vsub.f32 %v359, %v377
        %v384 = vsub.f32 %v360, %v377
        %v385 = vsub.f32 %v361, %v378
        %v386 = vsub.f32 %v362, %v378
        %v387 = vmul.f32 %v379, %v379
        %v388 = vmul.f32 %v380, %v380
        %v389 = vmul.f32 %v381, %v381
        %v390 = vmul.f32 %v382, %v382
        %v391 = vmul.f32 %v383, %v383
        %v392 = vmul.f32 %v384, %v384
        %v393 = vmul.f32 %v385, %v385
        %v394 = vmul.f32 %v386, %v386
        %v395 = vadd.f32 %v387, %v388
        %396 = vadd.xlane.f32.xlu0 %v395
        %v397 = vpop.xlane.xlu0 %396
        %v398 = vadd.f32 %v389, %v390
        %399 = vadd.xlane.f32.xlu0 %v398
        %v400 = vpop.xlane.xlu0 %399
        %v401 = vadd.f32 %v391, %v392
        %402 = vadd.xlane.f32.xlu0 %v401
        %v403 = vpop.xlane.xlu0 %402
        %v404 = vadd.f32 %v393, %v394
        %405 = vadd.xlane.f32.xlu0 %v404
        %v406 = vpop.xlane.xlu0 %405
        %v407 = vadd.f32 %v397, %v403
        %v408 = vadd.f32 %v400, %v406
        %v409 = vmul.f32 %v407, 0.001953125
        %v410 = vmul.f32 %v408, 0.001953125
        %v411 = vld [vmem:[%s346] sm:$0xff]
        %v412 = vld [vmem:[%s346 + $0x8] sm:$0xff]
        %v413 = vadd.f32 %v409, 1e-05
        %v414 = vadd.f32 %v410, 1e-05
        %v415 = vrsqrt.pop %v413
        %v416 = vrsqrt.pop %v414
        %v417 = vmul.f32 %v411, %v415
        %v418 = vmul.f32 %v412, %v416
        %v419 = vld [vmem:[%s300] sm:$0xff]
        %v420 = vld [vmem:[%s300 + $0x8] sm:$0xff]
        %v421 = vld [vmem:[%s300 + $0x10] sm:$0xff]
        %v422 = vld [vmem:[%s300 + $0x18] sm:$0xff]
        %v423 = vld [vmem:[%s300 + $0x20] sm:$0xff]
        %v424 = vld [vmem:[%s300 + $0x28] sm:$0xff]
        %v425 = vld [vmem:[%s300 + $0x30] sm:$0xff]
        %v426 = vld [vmem:[%s300 + $0x38] sm:$0xff]
        %428 = vset.pattern.permute.xlu0 0
        %429 = vperm.xlu0 %428, %v417
        %v430 = vpop.permute.xlu0 %429
        %433 = vset.pattern.permute.xlu0 0
        %434 = vperm.xlu0 %433, %v418
        %v435 = vpop.permute.xlu0 %434
        %v437 = vmul.f32 %v379, %v430
        %v438 = vmul.f32 %v380, %v430
        %v439 = vmul.f32 %v381, %v435
        %v440 = vmul.f32 %v382, %v435
        %v441 = vmul.f32 %v383, %v430
        %v442 = vmul.f32 %v384, %v430
        %v443 = vmul.f32 %v385, %v435
        %v444 = vmul.f32 %v386, %v435
        %v445 = vadd.f32 %v419, %v437
        %v446 = vadd.f32 %v420, %v438
        %v447 = vadd.f32 %v421, %v439
        %v448 = vadd.f32 %v422, %v440
        %v449 = vadd.f32 %v423, %v441
        %v450 = vadd.f32 %v424, %v442
        %v451 = vadd.f32 %v425, %v443
        %v452 = vadd.f32 %v426, %v444
        %v453 = vld [vmem:[%s352] sm:$0xff]
        %v454 = vld [vmem:[%s352 + $0x8] sm:$0xff]
        %456 = vset.pattern.permute.xlu0 0
        %457 = vperm.xlu0 %456, %v453
        %v458 = vpop.permute.xlu0 %457
        %461 = vset.pattern.permute.xlu0 0
        %462 = vperm.xlu0 %461, %v454
        %v463 = vpop.permute.xlu0 %462
        %v465 = vadd.f32 %v445, %v458
        %v466 = vadd.f32 %v446, %v458
        %v467 = vadd.f32 %v447, %v463
        %v468 = vadd.f32 %v448, %v463
        %v469 = vadd.f32 %v449, %v458
        %v470 = vadd.f32 %v450, %v458
        %v471 = vadd.f32 %v451, %v463
        %v472 = vadd.f32 %v452, %v463
        %v473 = vmax.f32 %v465, 0.0
        %v474 = vmax.f32 %v466, 0.0
        %v475 = vmax.f32 %v467, 0.0
        %v476 = vmax.f32 %v468, 0.0
        %v477 = vmax.f32 %v469, 0.0
        %v478 = vmax.f32 %v470, 0.0
        %v479 = vmax.f32 %v471, 0.0
        %v480 = vmax.f32 %v472, 0.0
        %481 = vst [vmem:[%s339] sm:$0xff] %v473
        %482 = vst [vmem:[%s339 + $0x8] sm:$0xff] %v474
        %483 = vst [vmem:[%s339 + $0x10] sm:$0xff] %v475
        %484 = vst [vmem:[%s339 + $0x18] sm:$0xff] %v476
        %485 = vst [vmem:[%s339 + $0x20] sm:$0xff] %v477
        %486 = vst [vmem:[%s339 + $0x28] sm:$0xff] %v478
        %487 = vst [vmem:[%s339 + $0x30] sm:$0xff] %v479
        %488 = vst [vmem:[%s339 + $0x38] sm:$0xff] %v480
        %s489 = sand.u32 %s136, 1
        %s490 = scalar_lea.sflag [#allocation4], %s489
        %s491 = sand.u32 %s136, 1
        %s492 = smul.addr %s491, 64
        %s493 = scalar_lea.vmem [#allocation7], %s492
        // Predicated region
        $region45: #{tpu_custom_call.1} parent=35 // pred_check
          %p494 = pneg %p146
        $region46: #{tpu_custom_call.1} parent=35 // pred_check_branch
          %496 = sbr.rel (%p494) target = $region48
        $region47: #{tpu_custom_call.1} parent=35 // pred_region
          #allocation13 [shape = 'u32[6]{0}', space=smem, size = 0x18, scoped, tag = 'DMA stride descriptor']
          %s497 = smul.u32 2, %s24
          %s499 = ssub.s32 1024, 1024
          %500 = vsyncadd %s490, %s499
          %s501 = smul.addr %s497, 2
          %s502 = smul.addr %s501, 128
          %s503 = scalar_lea.hbm %s4, %s502
          %s505 = sshll.u32 1, 14
          %s506 = sxor.u32 4294967295, %s505
          %s509 = sshll.u32 7, 18
          %s510 = sxor.u32 4294967295, %s509
          %s511 = sand.u32 0, %s510
          %s513 = sor.u32 %s511, 0
          %s514 = sshll.u32 %s493, 4
          %s515 = int_to_ptr.vmem [resolvable:$true] %s514
          %521 = sst [smem:[#allocation13]] 512
          %s522 = scalar_lea.smem [#allocation13], 1
          %523 = sst [smem:[%s522]] 1024
          %s524 = scalar_lea.smem [#allocation13], 2
          %525 = sst [smem:[%s524]] 2
          %s526 = scalar_lea.smem [#allocation13], 3
          %527 = sst [smem:[%s526]] 256
          %s528 = scalar_lea.smem [#allocation13], 4
          %529 = sst [smem:[%s528]] 256
          %s530 = scalar_lea.smem [#allocation13], 5
          %531 = sst [smem:[%s530]] 16
          %533 = dma.general %s515, 1024, %s503, %s490, 131072, [#allocation13], %s513, 0
        $region48: #{tpu_custom_call.1} parent=35 // pred_fallthru
          _
      $region36: #{tpu_custom_call.1} parent=5 // pred_fallthru
        _
      %p534 = scmp.le.s32.totalorder 2, %s19
      // Predicated region
      $region49: #{tpu_custom_call.1} parent=5 // pred_check
        %p535 = pneg %p534
      $region50: #{tpu_custom_call.1} parent=5 // pred_check_branch
        %537 = sbr.rel (%p535) target = $region52
      $region51: #{tpu_custom_call.1} parent=5 // pred_region
        %s538 = ssub.s32 %s19, 2
        // Predicated region
        $region53: #{tpu_custom_call.1} parent=51 // pred_check
          %p539 = pneg %p152
        $region54: #{tpu_custom_call.1} parent=51 // pred_check_branch
          %541 = sbr.rel (%p539) target = $region56
        $region55: #{tpu_custom_call.1} parent=51 // pred_region
          %s542 = sand.u32 %s137, 1
          %s543 = scalar_lea.sflag [#allocation4], %s542
          %s544 = sand.u32 %s137, 1
          %s545 = smul.addr %s544, 64
          %s546 = scalar_lea.vmem [#allocation7], %s545
          %547 = dma.done %s543, 1024
        $region56: #{tpu_custom_call.1} parent=51 // pred_fallthru
          _
      $region52: #{tpu_custom_call.1} parent=5 // pred_fallthru
        _
    $region6: #{tpu_custom_call.1} parent=1 // loop_footer
      %s23 = sadd.s32 1, %s19
    $region7: #{tpu_custom_call.1} parent=1 // loop_footer_branch
      %18 = sbr.rel target = $region3
    $region8: #{tpu_custom_call.1} parent=1 // loop_exit
      _
    %548 = vsyncpa [#allocation3], 1
    %s549 = scalar_lea.sflag [#allocation3], 1
    %550 = vsyncpa %s549, 1
    %551 = vsyncpa [#allocation6], 1
    %s552 = scalar_lea.sflag [#allocation6], 1
    %553 = vsyncpa %s552, 1
    %554 = vsyncpa [#allocation4], 1
    %s555 = scalar_lea.sflag [#allocation4], 1
    %556 = vsyncpa %s555, 1

</llo_original>
